<compile_context>
chip_gen: v6e
topology: v6e:2x2x1
jax: 0.10.0
libtpu: 0.0.40
codegen_flags: <defaults>
</compile_context>

<pallas_src>
import jax
import jax.numpy as jnp
from jax.experimental import pallas as pl
from jax.experimental.pallas import tpu as pltpu


# ----------------------------------------------------------------------------
# Kernel
# ----------------------------------------------------------------------------
def mlp_attack_all_kernel(
    x1_ref, x2_ref, x3_ref,
    w1_ref, w4_ref, wb_ref, wc_ref, w7_ref, w8a_ref, w8c_ref, bias_ref,
    out_ref,
):
    f32 = jnp.float32
    bf16 = jnp.bfloat16

    # packed biases: 128-aligned segments inside one (1, 768) f32 buffer
    b_a = bias_ref[:, 0:256]      # fc1 | fc4
    b_b = bias_ref[:, 256:384]    # fc2 | fc5
    b_c = bias_ref[:, 384:416]    # fc3 | fc6 (32 valid lanes)
    b_7 = bias_ref[:, 512:516]    # fc7       (4 valid lanes)
    b_8 = bias_ref[:, 640:642]    # fc8       (2 valid lanes)

    # in-kernel f32 -> bf16 cast (input prep no longer done in the wrapper)
    x1 = x1_ref[...].astype(bf16)
    x2 = x2_ref[...].astype(bf16)
    x3 = x3_ref[...].astype(bf16)

    # layer 1 of branches 1 & 2: two small dots, results concatenated at a
    # 128-lane (vreg-aligned) boundary so the rest of both branches runs fused.
    h1 = jnp.dot(x1, w1_ref[...], preferred_element_type=f32)      # (TB, 128)
    h2 = jnp.dot(x2, w4_ref[...], preferred_element_type=f32)      # (TB, 128)
    h = jnp.concatenate([h1, h2], axis=1)                          # (TB, 256)
    h = jnp.maximum(h + b_a, 0.0).astype(bf16)

    # fused branches 1+2, layers 2 & 3: block-diagonal weights
    h = jnp.dot(h, wb_ref[...], preferred_element_type=f32)        # (TB, 128)
    h = jnp.maximum(h + b_b, 0.0).astype(bf16)
    h = jnp.dot(h, wc_ref[...], preferred_element_type=f32)        # (TB, 32)
    h12 = jnp.maximum(h + b_c, 0.0).astype(bf16)                   # [h1_16 | h2_16]

    # branch 3: (TB, d3) -> 4
    h3 = jnp.dot(x3, w7_ref[...], preferred_element_type=f32)      # (TB, 4)
    h3 = jnp.maximum(h3 + b_7, 0.0).astype(bf16)

    # fc8 on concat([h1, h2, h3]) == sum of partial matmuls over split W8 slabs
    res = (jnp.dot(h12, w8a_ref[...], preferred_element_type=f32)
           + jnp.dot(h3, w8c_ref[...], preferred_element_type=f32))  # (TB, 128)
    # only the 2 real output lanes get the bias/ReLU and the store
    out_ref[...] = jnp.maximum(res[:, :2] + b_8, 0.0)               # (TB, 2)


# ----------------------------------------------------------------------------
# Wrapper
# ----------------------------------------------------------------------------
def _round_up(x, m):
    return (x + m - 1) // m * m


def _block_diag(a, b):
    m1, n1 = a.shape
    m2, n2 = b.shape
    out = jnp.zeros((m1 + m2, n1 + n2), a.dtype)
    out = out.at[:m1, :n1].set(a)
    out = out.at[m1:, n1:].set(b)
    return out


def _pad_lanes(x, n):
    return jnp.pad(x, ((0, 0), (0, n - x.shape[1])))


def mlp_attack_all(x1, x2, x3, params, *, block_b=None):
    (w1, b1), (w2, b2), (w3, b3), (w4, b4), (w5, b5), (w6, b6), (w7, b7), (w8, b8) = params
    d1, d2, d3 = w1.shape[0], w4.shape[0], w7.shape[0]
    bf16 = jnp.bfloat16

    # ---- parameter prep: bf16 weights, block-diag fusion for layers 2/3 ----
    w1b = w1.astype(bf16)                               # (d1, 128)
    w4b = w4.astype(bf16)                               # (d2, 128)
    w_b = _block_diag(w2, w5).astype(bf16)              # (256, 128)
    w_c = _block_diag(w3, w6).astype(bf16)              # (128, 32)
    w7b = w7.astype(bf16)                               # (d3, 4)
    w8a = _pad_lanes(w8[:32, :], 128).astype(bf16)      # (32, 128), lanes 2:128 zero
    w8c = _pad_lanes(w8[32:, :], 128).astype(bf16)      # (4, 128)

    biases = jnp.concatenate(
        [jnp.concatenate([b1, b4], axis=1),                        # [0, 256)
         jnp.concatenate([b2, b5], axis=1),                        # [256, 384)
         _pad_lanes(jnp.concatenate([b3, b6], axis=1), 128),       # [384, 512)
         _pad_lanes(b7, 128),                                      # [512, 640)
         _pad_lanes(b8, 128)],                                     # [640, 768)
        axis=1).astype(jnp.float32)                                # (1, 768)

    # ---- inputs: flatten only; cast to bf16 happens inside the kernel ----
    x1 = x1.reshape(-1, d1)
    x2 = x2.reshape(-1, d2)
    x3 = x3.reshape(-1, d3)
    B = x1.shape[0]

    if block_b is None:
        if B <= 32:
            # small-batch path: just satisfy the (8,128)/(16,128) tiling
            block_b = _round_up(max(B, 1), 16)
        else:
            # big tiles amortize the ~0.35us/step overhead; keep >= 2 grid
            # steps so both v7x TensorCores get work.  Cap at 2048 rows
            # (~13 MiB peak VMEM incl. lane-padded input buffers & temps).
            block_b = min(2048, _round_up(pl.cdiv(B, 2), 16))
    B_pad = _round_up(B, block_b)

    if B_pad != B:
        pad = ((0, B_pad - B), (0, 0))
        x1 = jnp.pad(x1, pad)
        x2 = jnp.pad(x2, pad)
        x3 = jnp.pad(x3, pad)

    grid = (B_pad // block_b,)
    weight_args = (w1b, w4b, w_b, w_c, w7b, w8a, w8c, biases)
    const_map = lambda i: (0, 0)                                   # params stay resident

    in_specs = (
        [pl.BlockSpec((block_b, d1), lambda i: (i, 0)),
         pl.BlockSpec((block_b, d2), lambda i: (i, 0)),
         pl.BlockSpec((block_b, d3), lambda i: (i, 0))]
        + [pl.BlockSpec(w.shape, const_map) for w in weight_args]
    )

    flops_row = 2 * (d1 * 128 + d2 * 128 + 256 * 128 + 128 * 32
                     + d3 * 4 + 32 * 128 + 4 * 128)
    bytes_weights = sum(int(w.size) * w.dtype.itemsize for w in weight_args)
    in_itemsize = x1.dtype.itemsize
    cost = pl.CostEstimate(
        flops=int(flops_row * B_pad),
        transcendentals=0,
        bytes_accessed=int(B_pad * ((d1 + d2 + d3) * in_itemsize + 2 * 4)
                           + bytes_weights),
    )

    out_pad = pl.pallas_call(
        mlp_attack_all_kernel,
        out_shape=jax.ShapeDtypeStruct((B_pad, 2), jnp.float32),
        grid=grid,
        in_specs=in_specs,
        out_specs=pl.BlockSpec((block_b, 2), lambda i: (i, 0)),
        compiler_params=pltpu.CompilerParams(
            dimension_semantics=("parallel",),
            vmem_limit_bytes=32 * 1024 * 1024,
        ),
        cost_estimate=cost,
    )(x1, x2, x3, *weight_args)

    return out_pad[:B, :]


# ----------------------------------------------------------------------------
# Parameters & pure-JAX reference
# ----------------------------------------------------------------------------
def init_params(key, dim_in_1, dim_in_2, dim_in_3):
    """Deterministic synthetic parameters (PyTorch Linear shapes, pre-transposed)."""
    dims = [
        (dim_in_1, 128), (128, 64), (64, 16),     # fc1, fc2, fc3
        (dim_in_2, 128), (128, 64), (64, 16),     # fc4, fc5, fc6
        (dim_in_3, 4),                            # fc7
        (36, 2),                                  # fc8
    ]
    params = []
    for (d_in, d_out) in dims:
        key, kw, kb = jax.random.split(key, 3)
        scale = 1.0 / jnp.sqrt(jnp.float32(d_in))
        w = jax.random.uniform(kw, (d_in, d_out), jnp.float32, -scale, scale)
        b = jax.random.uniform(kb, (1, d_out), jnp.float32, -scale, scale)
        params.append((w, b))
    return params


def reference_forward(x1, x2, x3, params):
    """Pure-JAX (f32) reference matching the PyTorch forward."""
    (w1, b1), (w2, b2), (w3, b3), (w4, b4), (w5, b5), (w6, b6), (w7, b7), (w8, b8) = params
    r = jax.nn.relu
    h1 = r(x1 @ w1 + b1); h1 = r(h1 @ w2 + b2); h1 = r(h1 @ w3 + b3)
    h2 = r(x2 @ w4 + b4); h2 = r(h2 @ w5 + b5); h2 = r(h2 @ w6 + b6)
    h3 = r(x3 @ w7 + b7)
    combine = jnp.concatenate([h1, h2, h3], axis=1)
    return r(combine @ w8 + b8)


if __name__ == "__main__":
    dim_in_1, dim_in_2, dim_in_3 = 32, 24, 10
    batch = 8

    key = jax.random.PRNGKey(0)
    kx1, kx2, kx3, kp = jax.random.split(key, 4)
    x1 = jax.random.normal(kx1, (batch, dim_in_1), jnp.float32)
    x2 = jax.random.normal(kx2, (batch, dim_in_2), jnp.float32)
    x3 = jax.random.normal(kx3, (batch, dim_in_3), jnp.float32)

    params = init_params(kp, dim_in_1, dim_in_2, dim_in_3)

    out = mlp_attack_all(x1, x2, x3, params)
    out = jax.block_until_ready(out)

    ref = reference_forward(x1, x2, x3, params)
    assert out.shape == (batch, 2)
    # bf16 MXU operands (f32 accumulation) -> relaxed tolerance vs f32 reference
    assert jnp.allclose(out, ref, atol=1e-2, rtol=1e-2), "mismatch vs reference"

    print("KERNEL_OK")
</pallas_src>

<mosaic_0001>
module attributes {stable_mosaic.version = 11 : i64} {
  func.func @mlp_attack_all_kernel(%arg0: i32, %arg1: memref<16x32xf32, #tpu.memory_space<vmem>>, %arg2: memref<16x24xf32, #tpu.memory_space<vmem>>, %arg3: memref<16x10xf32, #tpu.memory_space<vmem>>, %arg4: memref<32x128xbf16, #tpu.memory_space<vmem>>, %arg5: memref<24x128xbf16, #tpu.memory_space<vmem>>, %arg6: memref<256x128xbf16, #tpu.memory_space<vmem>>, %arg7: memref<128x32xbf16, #tpu.memory_space<vmem>>, %arg8: memref<10x4xbf16, #tpu.memory_space<vmem>>, %arg9: memref<32x128xbf16, #tpu.memory_space<vmem>>, %arg10: memref<4x128xbf16, #tpu.memory_space<vmem>>, %arg11: memref<1x768xf32, #tpu.memory_space<vmem>>, %arg12: memref<16x2xf32, #tpu.memory_space<vmem>>) attributes {dimension_semantics = [#tpu.dimension_semantics<parallel>], iteration_bounds = array<i64: 1>, scalar_prefetch = 0 : i64, scratch_operands = 0 : i64, tpu.core_type = #tpu.core_type<tc>, window_params = [{transform_indices = @transform_0, window_bounds = array<i64: 16, 32>}, {transform_indices = @transform_1, window_bounds = array<i64: 16, 24>}, {transform_indices = @transform_2, window_bounds = array<i64: 16, 10>}, {pipeline_mode = #tpu.pipeline_mode<synchronous>, transform_indices = @transform_3, window_bounds = array<i64: 32, 128>}, {pipeline_mode = #tpu.pipeline_mode<synchronous>, transform_indices = @transform_4, window_bounds = array<i64: 24, 128>}, {pipeline_mode = #tpu.pipeline_mode<synchronous>, transform_indices = @transform_5, window_bounds = array<i64: 256, 128>}, {pipeline_mode = #tpu.pipeline_mode<synchronous>, transform_indices = @transform_6, window_bounds = array<i64: 128, 32>}, {pipeline_mode = #tpu.pipeline_mode<synchronous>, transform_indices = @transform_7, window_bounds = array<i64: 10, 4>}, {pipeline_mode = #tpu.pipeline_mode<synchronous>, transform_indices = @transform_8, window_bounds = array<i64: 32, 128>}, {pipeline_mode = #tpu.pipeline_mode<synchronous>, transform_indices = @transform_9, window_bounds = array<i64: 4, 128>}, {pipeline_mode = #tpu.pipeline_mode<synchronous>, transform_indices = @transform_10, window_bounds = array<i64: 1, 768>}, {transform_indices = @transform_11, window_bounds = array<i64: 16, 2>}]} {
    %c0 = arith.constant 0 : index
    %c0_0 = arith.constant 0 : index
    %0 = vector.load %arg11[%c0, %c0_0] : memref<1x768xf32, #tpu.memory_space<vmem>>, vector<1x256xf32>
    %c0_1 = arith.constant 0 : index
    %c256 = arith.constant 256 : index
    %1 = vector.load %arg11[%c0_1, %c256] : memref<1x768xf32, #tpu.memory_space<vmem>>, vector<1x128xf32>
    %c0_2 = arith.constant 0 : index
    %c384 = arith.constant 384 : index
    %2 = vector.load %arg11[%c0_2, %c384] : memref<1x768xf32, #tpu.memory_space<vmem>>, vector<1x32xf32>
    %c0_3 = arith.constant 0 : index
    %c512 = arith.constant 512 : index
    %3 = vector.load %arg11[%c0_3, %c512] : memref<1x768xf32, #tpu.memory_space<vmem>>, vector<1x4xf32>
    %c0_4 = arith.constant 0 : index
    %c640 = arith.constant 640 : index
    %4 = vector.load %arg11[%c0_4, %c640] : memref<1x768xf32, #tpu.memory_space<vmem>>, vector<1x2xf32>
    %c0_5 = arith.constant 0 : index
    %c0_6 = arith.constant 0 : index
    %5 = vector.load %arg1[%c0_5, %c0_6] : memref<16x32xf32, #tpu.memory_space<vmem>>, vector<16x32xf32>
    %6 = arith.truncf %5 : vector<16x32xf32> to vector<16x32xbf16>
    %c0_7 = arith.constant 0 : index
    %c0_8 = arith.constant 0 : index
    %7 = vector.load %arg2[%c0_7, %c0_8] : memref<16x24xf32, #tpu.memory_space<vmem>>, vector<16x24xf32>
    %8 = arith.truncf %7 : vector<16x24xf32> to vector<16x24xbf16>
    %c0_9 = arith.constant 0 : index
    %c0_10 = arith.constant 0 : index
    %9 = vector.load %arg3[%c0_9, %c0_10] : memref<16x10xf32, #tpu.memory_space<vmem>>, vector<16x10xf32>
    %10 = arith.truncf %9 : vector<16x10xf32> to vector<16x10xbf16>
    %c0_11 = arith.constant 0 : index
    %c0_12 = arith.constant 0 : index
    %11 = vector.load %arg4[%c0_11, %c0_12] : memref<32x128xbf16, #tpu.memory_space<vmem>>, vector<32x128xbf16>
    %cst = arith.constant dense<0.000000e+00> : vector<16x128xf32>
    %12 = tpu.matmul %6, %11, %cst {dimension_numbers = #tpu.dot_dimension_numbers<[1], [0], [0], [1], [0, 0, 1, 1], [], []>} : vector<16x32xbf16>, vector<32x128xbf16>, vector<16x128xf32> -> vector<16x128xf32>
    %c0_13 = arith.constant 0 : index
    %c0_14 = arith.constant 0 : index
    %13 = vector.load %arg5[%c0_13, %c0_14] : memref<24x128xbf16, #tpu.memory_space<vmem>>, vector<24x128xbf16>
    %cst_15 = arith.constant dense<0.000000e+00> : vector<16x128xf32>
    %14 = tpu.matmul %8, %13, %cst_15 {dimension_numbers = #tpu.dot_dimension_numbers<[1], [0], [0], [1], [0, 0, 1, 1], [], []>} : vector<16x24xbf16>, vector<24x128xbf16>, vector<16x128xf32> -> vector<16x128xf32>
    %15 = tpu.concatenate %12, %14 in 1 : vector<16x128xf32>, vector<16x128xf32> -> vector<16x256xf32>
    %16 = vector.broadcast %0 : vector<1x256xf32> to vector<16x256xf32>
    %17 = arith.addf %15, %16 : vector<16x256xf32>
    %cst_16 = arith.constant 0.000000e+00 : f32
    %18 = vector.broadcast %cst_16 : f32 to vector<16x256xf32>
    %19 = arith.maximumf %17, %18 : vector<16x256xf32>
    %20 = arith.truncf %19 : vector<16x256xf32> to vector<16x256xbf16>
    %c0_17 = arith.constant 0 : index
    %c0_18 = arith.constant 0 : index
    %21 = vector.load %arg6[%c0_17, %c0_18] : memref<256x128xbf16, #tpu.memory_space<vmem>>, vector<256x128xbf16>
    %cst_19 = arith.constant dense<0.000000e+00> : vector<16x128xf32>
    %22 = tpu.matmul %20, %21, %cst_19 {dimension_numbers = #tpu.dot_dimension_numbers<[1], [0], [0], [1], [0, 0, 1, 1], [], []>} : vector<16x256xbf16>, vector<256x128xbf16>, vector<16x128xf32> -> vector<16x128xf32>
    %23 = vector.broadcast %1 : vector<1x128xf32> to vector<16x128xf32>
    %24 = arith.addf %22, %23 : vector<16x128xf32>
    %cst_20 = arith.constant 0.000000e+00 : f32
    %25 = vector.broadcast %cst_20 : f32 to vector<16x128xf32>
    %26 = arith.maximumf %24, %25 : vector<16x128xf32>
    %27 = arith.truncf %26 : vector<16x128xf32> to vector<16x128xbf16>
    %c0_21 = arith.constant 0 : index
    %c0_22 = arith.constant 0 : index
    %28 = vector.load %arg7[%c0_21, %c0_22] : memref<128x32xbf16, #tpu.memory_space<vmem>>, vector<128x32xbf16>
    %cst_23 = arith.constant dense<0.000000e+00> : vector<16x32xf32>
    %29 = tpu.matmul %27, %28, %cst_23 {dimension_numbers = #tpu.dot_dimension_numbers<[1], [0], [0], [1], [0, 0, 1, 1], [], []>} : vector<16x128xbf16>, vector<128x32xbf16>, vector<16x32xf32> -> vector<16x32xf32>
    %30 = vector.broadcast %2 : vector<1x32xf32> to vector<16x32xf32>
    %31 = arith.addf %29, %30 : vector<16x32xf32>
    %cst_24 = arith.constant 0.000000e+00 : f32
    %32 = vector.broadcast %cst_24 : f32 to vector<16x32xf32>
    %33 = arith.maximumf %31, %32 : vector<16x32xf32>
    %34 = arith.truncf %33 : vector<16x32xf32> to vector<16x32xbf16>
    %c0_25 = arith.constant 0 : index
    %c0_26 = arith.constant 0 : index
    %35 = vector.load %arg8[%c0_25, %c0_26] : memref<10x4xbf16, #tpu.memory_space<vmem>>, vector<10x4xbf16>
    %cst_27 = arith.constant dense<0.000000e+00> : vector<16x4xf32>
    %36 = tpu.matmul %10, %35, %cst_27 {dimension_numbers = #tpu.dot_dimension_numbers<[1], [0], [0], [1], [0, 0, 1, 1], [], []>} : vector<16x10xbf16>, vector<10x4xbf16>, vector<16x4xf32> -> vector<16x4xf32>
    %37 = vector.broadcast %3 : vector<1x4xf32> to vector<16x4xf32>
    %38 = arith.addf %36, %37 : vector<16x4xf32>
    %cst_28 = arith.constant 0.000000e+00 : f32
    %39 = vector.broadcast %cst_28 : f32 to vector<16x4xf32>
    %40 = arith.maximumf %38, %39 : vector<16x4xf32>
    %41 = arith.truncf %40 : vector<16x4xf32> to vector<16x4xbf16>
    %c0_29 = arith.constant 0 : index
    %c0_30 = arith.constant 0 : index
    %42 = vector.load %arg9[%c0_29, %c0_30] : memref<32x128xbf16, #tpu.memory_space<vmem>>, vector<32x128xbf16>
    %cst_31 = arith.constant dense<0.000000e+00> : vector<16x128xf32>
    %43 = tpu.matmul %34, %42, %cst_31 {dimension_numbers = #tpu.dot_dimension_numbers<[1], [0], [0], [1], [0, 0, 1, 1], [], []>} : vector<16x32xbf16>, vector<32x128xbf16>, vector<16x128xf32> -> vector<16x128xf32>
    %c0_32 = arith.constant 0 : index
    %c0_33 = arith.constant 0 : index
    %44 = vector.load %arg10[%c0_32, %c0_33] : memref<4x128xbf16, #tpu.memory_space<vmem>>, vector<4x128xbf16>
    %cst_34 = arith.constant dense<0.000000e+00> : vector<16x128xf32>
    %45 = tpu.matmul %41, %44, %cst_34 {dimension_numbers = #tpu.dot_dimension_numbers<[1], [0], [0], [1], [0, 0, 1, 1], [], []>} : vector<16x4xbf16>, vector<4x128xbf16>, vector<16x128xf32> -> vector<16x128xf32>
    %46 = arith.addf %43, %45 : vector<16x128xf32>
    %47 = vector.extract_strided_slice %46 {offsets = [0, 0], sizes = [16, 2], strides = [1, 1]} : vector<16x128xf32> to vector<16x2xf32>
    %48 = vector.broadcast %4 : vector<1x2xf32> to vector<16x2xf32>
    %49 = arith.addf %47, %48 : vector<16x2xf32>
    %cst_35 = arith.constant 0.000000e+00 : f32
    %50 = vector.broadcast %cst_35 : f32 to vector<16x2xf32>
    %51 = arith.maximumf %49, %50 : vector<16x2xf32>
    %c0_36 = arith.constant 0 : index
    %c0_37 = arith.constant 0 : index
    %52 = vector.load %arg12[%c0_36, %c0_37] : memref<16x2xf32, #tpu.memory_space<vmem>>, vector<16x2xf32>
    tpu.vector_store %arg12[%c0_36, %c0_37], %51 {strides = array<i32>} : memref<16x2xf32, #tpu.memory_space<vmem>>, vector<16x2xf32>,
    return
  }
  func.func @transform_0(%arg0: i32) -> (i32, i32) {
    %c0_i32 = arith.constant 0 : i32
    %c0_i32_0 = arith.constant 0 : i32
    return %arg0, %c0_i32 : i32, i32
  }
  func.func @transform_1(%arg0: i32) -> (i32, i32) {
    %c0_i32 = arith.constant 0 : i32
    %c0_i32_0 = arith.constant 0 : i32
    return %arg0, %c0_i32 : i32, i32
  }
  func.func @transform_2(%arg0: i32) -> (i32, i32) {
    %c0_i32 = arith.constant 0 : i32
    %c0_i32_0 = arith.constant 0 : i32
    return %arg0, %c0_i32 : i32, i32
  }
  func.func @transform_3(%arg0: i32) -> (i32, i32) {
    %c0_i32 = arith.constant 0 : i32
    %c0_i32_0 = arith.constant 0 : i32
    %c0_i32_1 = arith.constant 0 : i32
    return %c0_i32, %c0_i32_0 : i32, i32
  }
  func.func @transform_4(%arg0: i32) -> (i32, i32) {
    %c0_i32 = arith.constant 0 : i32
    %c0_i32_0 = arith.constant 0 : i32
    %c0_i32_1 = arith.constant 0 : i32
    return %c0_i32, %c0_i32_0 : i32, i32
  }
  func.func @transform_5(%arg0: i32) -> (i32, i32) {
    %c0_i32 = arith.constant 0 : i32
    %c0_i32_0 = arith.constant 0 : i32
    %c0_i32_1 = arith.constant 0 : i32
    return %c0_i32, %c0_i32_0 : i32, i32
  }
  func.func @transform_6(%arg0: i32) -> (i32, i32) {
    %c0_i32 = arith.constant 0 : i32
    %c0_i32_0 = arith.constant 0 : i32
    %c0_i32_1 = arith.constant 0 : i32
    return %c0_i32, %c0_i32_0 : i32, i32
  }
  func.func @transform_7(%arg0: i32) -> (i32, i32) {
    %c0_i32 = arith.constant 0 : i32
    %c0_i32_0 = arith.constant 0 : i32
    %c0_i32_1 = arith.constant 0 : i32
    return %c0_i32, %c0_i32_0 : i32, i32
  }
  func.func @transform_8(%arg0: i32) -> (i32, i32) {
    %c0_i32 = arith.constant 0 : i32
    %c0_i32_0 = arith.constant 0 : i32
    %c0_i32_1 = arith.constant 0 : i32
    return %c0_i32, %c0_i32_0 : i32, i32
  }
  func.func @transform_9(%arg0: i32) -> (i32, i32) {
    %c0_i32 = arith.constant 0 : i32
    %c0_i32_0 = arith.constant 0 : i32
    %c0_i32_1 = arith.constant 0 : i32
    return %c0_i32, %c0_i32_0 : i32, i32
  }
  func.func @transform_10(%arg0: i32) -> (i32, i32) {
    %c0_i32 = arith.constant 0 : i32
    %c0_i32_0 = arith.constant 0 : i32
    %c0_i32_1 = arith.constant 0 : i32
    return %c0_i32, %c0_i32_0 : i32, i32
  }
  func.func @transform_11(%arg0: i32) -> (i32, i32) {
    %c0_i32 = arith.constant 0 : i32
    %c0_i32_0 = arith.constant 0 : i32
    return %arg0, %c0_i32 : i32, i32
  }
}

</mosaic_0001>

<llo_original>
// kernel: tpu_custom_call.1
$region0: #{tpu_custom_call.1}
  #allocation0 [shape = 'u32[]', space=smem, size = 0x4, offset = 0x4, fixed_abs, tag = 'smem constant byte address 0x4 - core index']
  #allocation1 [shape = 'u32[144,128]{1,0:T(1,128)}', space=vmem, size = 0x12000, scoped, tag = 'internal scratch']
  %s0 = inlined_call_operand.vmem [shape: f32[16,32], index: 0, kind: input, shape index: {}]
  %s1 = inlined_call_operand.vmem [shape: f32[16,24], index: 1, kind: input, shape index: {}]
  %s2 = inlined_call_operand.vmem [shape: f32[16,10], index: 2, kind: input, shape index: {}]
  %s3 = inlined_call_operand.vmem [shape: bf16[32,128], index: 3, kind: input, shape index: {}]
  %s4 = inlined_call_operand.hbm [shape: bf16[24,128], index: 4, kind: input, shape index: {}]
  %s5 = inlined_call_operand.hbm [shape: bf16[256,128], index: 5, kind: input, shape index: {}]
  %s6 = inlined_call_operand.vmem [shape: bf16[128,32], index: 6, kind: input, shape index: {}]
  %s7 = inlined_call_operand.vmem [shape: bf16[10,4], index: 7, kind: input, shape index: {}]
  %s8 = inlined_call_operand.vmem [shape: bf16[32,128], index: 8, kind: input, shape index: {}]
  %s9 = inlined_call_operand.vmem [shape: bf16[4,128], index: 9, kind: input, shape index: {}]
  %s10 = inlined_call_operand.vmem [shape: f32[1,768], index: 10, kind: input, shape index: {}]
  %s11 = inlined_call_operand.vmem [shape: f32[16,2], index: 11, kind: output, shape index: {}]
  %s12 = sld [smem:[#allocation0]]
  $region62: #{tpu_custom_call.1} parent=0
    _
  %s14 = ssub.s32 1, %s12
  %s15 = scalar_select 0, %s14, %s12
  $region1: #{tpu_custom_call.1} parent=0
    #allocation2 [shape = 'u8[6144]{0}', space=vmem, size = 0x1800, scoped, tag = 'input window, operand 4, single buffered']
    #allocation3 [shape = 's32[1]{0}', space=sflag, size = 0x4, scoped, tag = 'scoped memory for tpu_custom_call.1']
    #allocation4 [shape = 'u8[65536]{0}', space=vmem, size = 0x10000, scoped, tag = 'input window, operand 5, single buffered']
    #allocation5 [shape = 's32[1]{0}', space=sflag, size = 0x4, scoped, tag = 'scoped memory for tpu_custom_call.1']
    %16 = vsyncpa [#allocation3], 0
    %17 = vsyncpa [#allocation5], 0
    // Predicated region
    $region2: #{tpu_custom_call.1} parent=1 // pred_check
      _
    $region3: #{tpu_custom_call.1} parent=1 // pred_check_branch
      %19 = sbr.rel (0) target = $region5
    $region4: #{tpu_custom_call.1} parent=1 // pred_region
      _
    $region5: #{tpu_custom_call.1} parent=1 // pred_fallthru
      _
    // Predicated region
    $region6: #{tpu_custom_call.1} parent=1 // pred_check
      _
    $region7: #{tpu_custom_call.1} parent=1 // pred_check_branch
      %21 = sbr.rel (0) target = $region9
    $region8: #{tpu_custom_call.1} parent=1 // pred_region
      _
    $region9: #{tpu_custom_call.1} parent=1 // pred_fallthru
      _
    // Predicated region
    $region10: #{tpu_custom_call.1} parent=1 // pred_check
      _
    $region11: #{tpu_custom_call.1} parent=1 // pred_check_branch
      %23 = sbr.rel (0) target = $region13
    $region12: #{tpu_custom_call.1} parent=1 // pred_region
      _
    $region13: #{tpu_custom_call.1} parent=1 // pred_fallthru
      _
    // Predicated region
    $region14: #{tpu_custom_call.1} parent=1 // pred_check
      _
    $region15: #{tpu_custom_call.1} parent=1 // pred_check_branch
      %25 = sbr.rel (0) target = $region17
    $region16: #{tpu_custom_call.1} parent=1 // pred_region
      _
    $region17: #{tpu_custom_call.1} parent=1 // pred_fallthru
      _
    // Predicated region
    $region18: #{tpu_custom_call.1} parent=1 // pred_check
      _
    $region19: #{tpu_custom_call.1} parent=1 // pred_check_branch
      %27 = sbr.rel (0) target = $region21
    $region20: #{tpu_custom_call.1} parent=1 // pred_region
      %s29 = ssub.s32 192, 192
      %30 = vsyncadd [#allocation3], %s29
      %s31 = sshll.u32 [#allocation2], 4
      %s32 = int_to_ptr.vmem [resolvable:$true] %s31
      %37 = dma.hbm_to_vmem [thread:$0]  %s4, 192, %s32, [#allocation3], 64, 64, 4
    $region21: #{tpu_custom_call.1} parent=1 // pred_fallthru
      _
    // Predicated region
    $region22: #{tpu_custom_call.1} parent=1 // pred_check
      _
    $region23: #{tpu_custom_call.1} parent=1 // pred_check_branch
      %39 = sbr.rel (0) target = $region25
    $region24: #{tpu_custom_call.1} parent=1 // pred_region
      %s41 = ssub.s32 2048, 2048
      %42 = vsyncadd [#allocation5], %s41
      %s43 = sshll.u32 [#allocation4], 4
      %s44 = int_to_ptr.vmem [resolvable:$true] %s43
      %49 = dma.hbm_to_vmem [thread:$0]  %s5, 2048, %s44, [#allocation5], 64, 64, 4
    $region25: #{tpu_custom_call.1} parent=1 // pred_fallthru
      _
    // Predicated region
    $region26: #{tpu_custom_call.1} parent=1 // pred_check
      _
    $region27: #{tpu_custom_call.1} parent=1 // pred_check_branch
      %51 = sbr.rel (0) target = $region29
    $region28: #{tpu_custom_call.1} parent=1 // pred_region
      _
    $region29: #{tpu_custom_call.1} parent=1 // pred_fallthru
      _
    // Predicated region
    $region30: #{tpu_custom_call.1} parent=1 // pred_check
      _
    $region31: #{tpu_custom_call.1} parent=1 // pred_check_branch
      %53 = sbr.rel (0) target = $region33
    $region32: #{tpu_custom_call.1} parent=1 // pred_region
      _
    $region33: #{tpu_custom_call.1} parent=1 // pred_fallthru
      _
    // Predicated region
    $region34: #{tpu_custom_call.1} parent=1 // pred_check
      _
    $region35: #{tpu_custom_call.1} parent=1 // pred_check_branch
      %55 = sbr.rel (0) target = $region37
    $region36: #{tpu_custom_call.1} parent=1 // pred_region
      _
    $region37: #{tpu_custom_call.1} parent=1 // pred_fallthru
      _
    // Predicated region
    $region38: #{tpu_custom_call.1} parent=1 // pred_check
      _
    $region39: #{tpu_custom_call.1} parent=1 // pred_check_branch
      %57 = sbr.rel (0) target = $region41
    $region40: #{tpu_custom_call.1} parent=1 // pred_region
      _
    $region41: #{tpu_custom_call.1} parent=1 // pred_fallthru
      _
    // Predicated region
    $region42: #{tpu_custom_call.1} parent=1 // pred_check
      _
    $region43: #{tpu_custom_call.1} parent=1 // pred_check_branch
      %59 = sbr.rel (0) target = $region45
    $region44: #{tpu_custom_call.1} parent=1 // pred_region
      _
    $region45: #{tpu_custom_call.1} parent=1 // pred_fallthru
      _
    // Predicated region
    $region46: #{tpu_custom_call.1} parent=1 // pred_check
      _
    $region47: #{tpu_custom_call.1} parent=1 // pred_check_branch
      %61 = sbr.rel (0) target = $region49
    $region48: #{tpu_custom_call.1} parent=1 // pred_region
      %62 = dma.done [#allocation3], 192
    $region49: #{tpu_custom_call.1} parent=1 // pred_fallthru
      _
    // Predicated region
    $region50: #{tpu_custom_call.1} parent=1 // pred_check
      _
    $region51: #{tpu_custom_call.1} parent=1 // pred_check_branch
      %64 = sbr.rel (0) target = $region53
    $region52: #{tpu_custom_call.1} parent=1 // pred_region
      %65 = dma.done [#allocation5], 2048
    $region53: #{tpu_custom_call.1} parent=1 // pred_fallthru
      _
    %v67 = vld [vmem:[%s10] sm:$0x3]
    %v68 = vld [vmem:[%s10 + $0x2] sm:$0x1]
    %v69 = vld [vmem:[%s10 + $0x3] sm:$0x1]
    %v70 = vld [vmem:[%s10 + $0x4] sm:$0x1]
    %v71 = vld [vmem:[%s10 + $0x5] sm:$0x1]
    %v72 = vld [vmem:[%s0] sm:$0xff]
    %v73 = vld [vmem:[%s0 + $0x8] sm:$0xff]
    %v74 = vpack.c.bf16 %v73, %v72
    %v75 = vld [vmem:[%s1] sm:$0xff]
    %v76 = vld [vmem:[%s1 + $0x8] sm:$0xff]
    %v77 = vpack.c.bf16 %v76, %v75
    %v78 = vld [vmem:[%s2] sm:$0xff]
    %v79 = vld [vmem:[%s2 + $0x8] sm:$0xff]
    %v80 = vpack.c.bf16 %v79, %v78
    %v81 = vld [vmem:[%s3] sm:$0xf]
    %v82 = vld [vmem:[%s3 + $0x4] sm:$0xf]
    %v83 = vld [vmem:[%s3 + $0x8] sm:$0xf]
    %v84 = vld [vmem:[%s3 + $0xc] sm:$0xf]
    %v89 = vunpack.c.l.b16 %v81
    %v90 = vunpack.c.l.b16 %v82
    %v91 = vunpack.c.l.b16 %v83
    %v92 = vunpack.c.l.b16 %v84
    %v93 = vpack.c.b16 %v90, %v89
    %v94 = vpack.c.b16 %v92, %v91
    %vm97 = vcmask 261120
    %v99 = vsel %vm97, %v74, 0
    %101 = vmatprep.subr.bf16.mxu0 0
    %102 = vmatpush1.bf16.msra.mxu0 0
    %103 = vmatprep.subr.bf16.mxu0 0
    %104 = vmatpush1.bf16.msra.mxu0 0
    %105 = vmatprep.subr.bf16.mxu0 0
    %106 = vmatpush1.bf16.msra.mxu0 0
    %107 = vmatprep.subr.bf16.mxu0 0
    %108 = vmatpush1.bf16.msra.mxu0 0
    %109 = vmatprep.subr.bf16.mxu0 0
    %110 = vmatpush1.bf16.msra.mxu0 0
    %111 = vmatprep.subr.bf16.mxu0 0
    %112 = vmatpush1.bf16.msra.mxu0 0
    %113 = vmatprep.subr.bf16.mxu0 0
    %114 = vmatpush1.bf16.msra.mxu0 %v94
    %115 = vmatprep.subr.bf16.mxu0 0
    %116 = vmatpush1.bf16.msra.mxu0 %v93
    %117 = vmatprep.subr.bf16.mxu0 0
    %118 = vmatpush2.bf16.msra.mxu0 0
    %119 = vmatprep.subr.bf16.mxu0 0
    %120 = vmatpush2.bf16.msra.mxu0 0
    %121 = vmatprep.subr.bf16.mxu0 0
    %122 = vmatpush2.bf16.msra.mxu0 0
    %123 = vmatprep.subr.bf16.mxu0 0
    %124 = vmatpush2.bf16.msra.mxu0 0
    %125 = vmatprep.subr.bf16.mxu0 0
    %126 = vmatpush2.bf16.msra.mxu0 0
    %127 = vmatprep.subr.bf16.mxu0 0
    %128 = vmatpush2.bf16.msra.mxu0 0
    %129 = vmatprep.subr.bf16.mxu0 0
    %130 = vmatpush2.bf16.msra.mxu0 0
    %131 = vmatprep.subr.bf16.mxu0 0
    %132 = vmatpush2.bf16.msra.mxu0 0
    %133 = vmatprep.mubr.bf16.mxu0 0
    %134 = vmatmul.mubr.bf16.gmra.mxu0 %v99
    %v135 = vpop.f32.mrf.mxu0
    %v136 = vadd.f32 0.0, %v135
    %v137 = vpop.f32.mrf.mxu0
    %v138 = vpop.f32.mrf.mxu0
    %v139 = vadd.f32 0.0, %v138
    %v140 = vpop.f32.mrf.mxu0
    %141 = vdwg.mxu0
    %v142 = vld [vmem:[#allocation2] sm:$0xf]
    %v143 = vld [vmem:[#allocation2 + $0x4] sm:$0xf]
    %v144 = vld [vmem:[#allocation2 + $0x8] sm:$0xf]
    %v148 = vunpack.c.l.b16 %v142
    %v149 = vunpack.c.l.b16 %v143
    %v150 = vunpack.c.l.b16 %v144
    %v151 = vpack.c.b16 %v149, %v148
    %v152 = vpack.c.b16 %v150, %v150
    %vm154 = vcmask 195584
    %v156 = vsel %vm154, %v77, 0
    %vm158 = vcmask 1043456
    %v160 = vsel %vm158, %v152, 0
    %162 = vmatprep.subr.bf16.mxu0 0
    %163 = vmatpush1.bf16.msra.mxu0 0
    %164 = vmatprep.subr.bf16.mxu0 0
    %165 = vmatpush1.bf16.msra.mxu0 0
    %166 = vmatprep.subr.bf16.mxu0 0
    %167 = vmatpush1.bf16.msra.mxu0 0
    %168 = vmatprep.subr.bf16.mxu0 0
    %169 = vmatpush1.bf16.msra.mxu0 0
    %170 = vmatprep.subr.bf16.mxu0 0
    %171 = vmatpush1.bf16.msra.mxu0 0
    %172 = vmatprep.subr.bf16.mxu0 0
    %173 = vmatpush1.bf16.msra.mxu0 0
    %174 = vmatprep.subr.bf16.mxu0 0
    %175 = vmatpush1.bf16.msra.mxu0 %v160
    %176 = vmatprep.subr.bf16.mxu0 0
    %177 = vmatpush1.bf16.msra.mxu0 %v151
    %178 = vmatprep.subr.bf16.mxu0 0
    %179 = vmatpush2.bf16.msra.mxu0 0
    %180 = vmatprep.subr.bf16.mxu0 0
    %181 = vmatpush2.bf16.msra.mxu0 0
    %182 = vmatprep.subr.bf16.mxu0 0
    %183 = vmatpush2.bf16.msra.mxu0 0
    %184 = vmatprep.subr.bf16.mxu0 0
    %185 = vmatpush2.bf16.msra.mxu0 0
    %186 = vmatprep.subr.bf16.mxu0 0
    %187 = vmatpush2.bf16.msra.mxu0 0
    %188 = vmatprep.subr.bf16.mxu0 0
    %189 = vmatpush2.bf16.msra.mxu0 0
    %190 = vmatprep.subr.bf16.mxu0 0
    %191 = vmatpush2.bf16.msra.mxu0 0
    %192 = vmatprep.subr.bf16.mxu0 0
    %193 = vmatpush2.bf16.msra.mxu0 0
    %194 = vmatprep.mubr.bf16.mxu0 0
    %195 = vmatmul.mubr.bf16.gmra.mxu0 %v156
    %v196 = vpop.f32.mrf.mxu0
    %v197 = vadd.f32 0.0, %v196
    %v198 = vpop.f32.mrf.mxu0
    %v199 = vpop.f32.mrf.mxu0
    %v200 = vadd.f32 0.0, %v199
    %v201 = vpop.f32.mrf.mxu0
    %202 = vdwg.mxu0
    %v204 = vlaneseq
    %v205 = vshrl.u32 %v204, 7
    %v206 = vsub.s32 0, %v205
    %v207 = vrot.slane %v67, %v206
    %v208 = vlaneseq
    %v209 = vshrl.u32 %v208, 7
    %v210 = vsub.s32 1, %v209
    %v211 = vrot.slane %v67, %v210
    %v214 = vadd.f32 %v136, %v207
    %v215 = vadd.f32 %v197, %v211
    %v216 = vadd.f32 %v139, %v207
    %v217 = vadd.f32 %v200, %v211
    %v218 = vmax.f32 %v214, 0.0
    %v219 = vmax.f32 %v215, 0.0
    %v220 = vmax.f32 %v216, 0.0
    %v221 = vmax.f32 %v217, 0.0
    %v222 = vpack.c.bf16 %v220, %v218
    %v223 = vpack.c.bf16 %v221, %v219
    %v224 = vld [vmem:[#allocation4] sm:$0xf]
    %v225 = vld [vmem:[#allocation4 + $0x4] sm:$0xf]
    %v226 = vld [vmem:[#allocation4 + $0x8] sm:$0xf]
    %v227 = vld [vmem:[#allocation4 + $0xc] sm:$0xf]
    %v228 = vld [vmem:[#allocation4 + $0x10] sm:$0xf]
    %v229 = vld [vmem:[#allocation4 + $0x14] sm:$0xf]
    %v230 = vld [vmem:[#allocation4 + $0x18] sm:$0xf]
    %v231 = vld [vmem:[#allocation4 + $0x1c] sm:$0xf]
    %v232 = vld [vmem:[#allocation4 + $0x20] sm:$0xf]
    %v233 = vld [vmem:[#allocation4 + $0x24] sm:$0xf]
    %v234 = vld [vmem:[#allocation4 + $0x28] sm:$0xf]
    %v235 = vld [vmem:[#allocation4 + $0x2c] sm:$0xf]
    %v236 = vld [vmem:[#allocation4 + $0x30] sm:$0xf]
    %v237 = vld [vmem:[#allocation4 + $0x34] sm:$0xf]
    %v238 = vld [vmem:[#allocation4 + $0x38] sm:$0xf]
    %v239 = vld [vmem:[#allocation4 + $0x3c] sm:$0xf]
    %v240 = vld [vmem:[#allocation4 + $0x40] sm:$0xf]
    %v241 = vld [vmem:[#allocation4 + $0x44] sm:$0xf]
    %v242 = vld [vmem:[#allocation4 + $0x48] sm:$0xf]
    %v243 = vld [vmem:[#allocation4 + $0x4c] sm:$0xf]
    %v244 = vld [vmem:[#allocation4 + $0x50] sm:$0xf]
    %v245 = vld [vmem:[#allocation4 + $0x54] sm:$0xf]
    %v246 = vld [vmem:[#allocation4 + $0x58] sm:$0xf]
    %v247 = vld [vmem:[#allocation4 + $0x5c] sm:$0xf]
    %v248 = vld [vmem:[#allocation4 + $0x60] sm:$0xf]
    %v249 = vld [vmem:[#allocation4 + $0x64] sm:$0xf]
    %v250 = vld [vmem:[#allocation4 + $0x68] sm:$0xf]
    %v251 = vld [vmem:[#allocation4 + $0x6c] sm:$0xf]
    %v252 = vld [vmem:[#allocation4 + $0x70] sm:$0xf]
    %v253 = vld [vmem:[#allocation4 + $0x74] sm:$0xf]
    %v254 = vld [vmem:[#allocation4 + $0x78] sm:$0xf]
    %v255 = vld [vmem:[#allocation4 + $0x7c] sm:$0xf]
    %v257 = vlaneseq
    %v258 = vshrl.u32 %v257, 7
    %v259 = vsub.s32 0, %v258
    %v260 = vrot.slane %v68, %v259
    %v294 = vunpack.c.l.b16 %v224
    %v295 = vunpack.c.l.b16 %v225
    %v296 = vunpack.c.l.b16 %v226
    %v297 = vunpack.c.l.b16 %v227
    %v298 = vunpack.c.l.b16 %v228
    %v299 = vunpack.c.l.b16 %v229
    %v300 = vunpack.c.l.b16 %v230
    %v301 = vunpack.c.l.b16 %v231
    %v302 = vunpack.c.l.b16 %v232
    %v303 = vunpack.c.l.b16 %v233
    %v304 = vunpack.c.l.b16 %v234
    %v305 = vunpack.c.l.b16 %v235
    %v306 = vunpack.c.l.b16 %v236
    %v307 = vunpack.c.l.b16 %v237
    %v308 = vunpack.c.l.b16 %v238
    %v309 = vunpack.c.l.b16 %v239
    %v310 = vunpack.c.l.b16 %v240
    %v311 = vunpack.c.l.b16 %v241
    %v312 = vunpack.c.l.b16 %v242
    %v313 = vunpack.c.l.b16 %v243
    %v314 = vunpack.c.l.b16 %v244
    %v315 = vunpack.c.l.b16 %v245
    %v316 = vunpack.c.l.b16 %v246
    %v317 = vunpack.c.l.b16 %v247
    %v318 = vunpack.c.l.b16 %v248
    %v319 = vunpack.c.l.b16 %v249
    %v320 = vunpack.c.l.b16 %v250
    %v321 = vunpack.c.l.b16 %v251
    %v322 = vunpack.c.l.b16 %v252
    %v323 = vunpack.c.l.b16 %v253
    %v324 = vunpack.c.l.b16 %v254
    %v325 = vunpack.c.l.b16 %v255
    %v326 = vpack.c.b16 %v295, %v294
    %v327 = vpack.c.b16 %v297, %v296
    %v328 = vpack.c.b16 %v299, %v298
    %v329 = vpack.c.b16 %v301, %v300
    %v330 = vpack.c.b16 %v303, %v302
    %v331 = vpack.c.b16 %v305, %v304
    %v332 = vpack.c.b16 %v307, %v306
    %v333 = vpack.c.b16 %v309, %v308
    %v334 = vpack.c.b16 %v311, %v310
    %v335 = vpack.c.b16 %v313, %v312
    %v336 = vpack.c.b16 %v315, %v314
    %v337 = vpack.c.b16 %v317, %v316
    %v338 = vpack.c.b16 %v319, %v318
    %v339 = vpack.c.b16 %v321, %v320
    %v340 = vpack.c.b16 %v323, %v322
    %v341 = vpack.c.b16 %v325, %v324
    %358 = vmatprep.subr.bf16.mxu0 0
    %359 = vmatpush1.bf16.msra.mxu0 %v333
    %360 = vmatprep.subr.bf16.mxu0 0
    %361 = vmatpush1.bf16.msra.mxu0 %v332
    %362 = vmatprep.subr.bf16.mxu0 0
    %363 = vmatpush1.bf16.msra.mxu0 %v331
    %364 = vmatprep.subr.bf16.mxu0 0
    %365 = vmatpush1.bf16.msra.mxu0 %v330
    %366 = vmatprep.subr.bf16.mxu0 0
    %367 = vmatpush1.bf16.msra.mxu0 %v329
    %368 = vmatprep.subr.bf16.mxu0 0
    %369 = vmatpush1.bf16.msra.mxu0 %v328
    %370 = vmatprep.subr.bf16.mxu0 0
    %371 = vmatpush1.bf16.msra.mxu0 %v327
    %372 = vmatprep.subr.bf16.mxu0 0
    %373 = vmatpush1.bf16.msra.mxu0 %v326
    %374 = vmatprep.subr.bf16.mxu0 0
    %375 = vmatpush2.bf16.msra.mxu0 %v341
    %376 = vmatprep.subr.bf16.mxu0 0
    %377 = vmatpush2.bf16.msra.mxu0 %v340
    %378 = vmatprep.subr.bf16.mxu0 0
    %379 = vmatpush2.bf16.msra.mxu0 %v339
    %380 = vmatprep.subr.bf16.mxu0 0
    %381 = vmatpush2.bf16.msra.mxu0 %v338
    %382 = vmatprep.subr.bf16.mxu0 0
    %383 = vmatpush2.bf16.msra.mxu0 %v337
    %384 = vmatprep.subr.bf16.mxu0 0
    %385 = vmatpush2.bf16.msra.mxu0 %v336
    %386 = vmatprep.subr.bf16.mxu0 0
    %387 = vmatpush2.bf16.msra.mxu0 %v335
    %388 = vmatprep.subr.bf16.mxu0 0
    %389 = vmatpush2.bf16.msra.mxu0 %v334
    %390 = vmatprep.mubr.bf16.mxu0 %v223
    %391 = vmatmul.mubr.bf16.gmra.mxu0 %v222
    %v392 = vpop.f32.mrf.mxu0
    %v393 = vadd.f32 %v260, %v392
    %v394 = vpop.f32.mrf.mxu0
    %v395 = vpop.f32.mrf.mxu0
    %v396 = vadd.f32 %v260, %v395
    %v397 = vpop.f32.mrf.mxu0
    %398 = vdwg.mxu0
    %v399 = vmax.f32 %v393, 0.0
    %v400 = vmax.f32 %v396, 0.0
    %v401 = vpack.c.bf16 %v400, %v399
    %v402 = vld [vmem:[%s6] sm:$0xf]
    %v403 = vld [vmem:[%s6 + $0x4] sm:$0xf]
    %v404 = vld [vmem:[%s6 + $0x8] sm:$0xf]
    %v405 = vld [vmem:[%s6 + $0xc] sm:$0xf]
    %v406 = vld [vmem:[%s6 + $0x10] sm:$0xf]
    %v407 = vld [vmem:[%s6 + $0x14] sm:$0xf]
    %v408 = vld [vmem:[%s6 + $0x18] sm:$0xf]
    %v409 = vld [vmem:[%s6 + $0x1c] sm:$0xf]
    %v410 = vld [vmem:[%s6 + $0x20] sm:$0xf]
    %v411 = vld [vmem:[%s6 + $0x24] sm:$0xf]
    %v412 = vld [vmem:[%s6 + $0x28] sm:$0xf]
    %v413 = vld [vmem:[%s6 + $0x2c] sm:$0xf]
    %v414 = vld [vmem:[%s6 + $0x30] sm:$0xf]
    %v415 = vld [vmem:[%s6 + $0x34] sm:$0xf]
    %v416 = vld [vmem:[%s6 + $0x38] sm:$0xf]
    %v417 = vld [vmem:[%s6 + $0x3c] sm:$0xf]
    %v419 = vlaneseq
    %v420 = vshrl.u32 %v419, 7
    %v421 = vsub.s32 0, %v420
    %v422 = vrot.slane %v69, %v421
    %v440 = vunpack.c.l.b16 %v402
    %v441 = vunpack.c.l.b16 %v403
    %v442 = vunpack.c.l.b16 %v404
    %v443 = vunpack.c.l.b16 %v405
    %v444 = vunpack.c.l.b16 %v406
    %v445 = vunpack.c.l.b16 %v407
    %v446 = vunpack.c.l.b16 %v408
    %v447 = vunpack.c.l.b16 %v409
    %v448 = vunpack.c.l.b16 %v410
    %v449 = vunpack.c.l.b16 %v411
    %v450 = vunpack.c.l.b16 %v412
    %v451 = vunpack.c.l.b16 %v413
    %v452 = vunpack.c.l.b16 %v414
    %v453 = vunpack.c.l.b16 %v415
    %v454 = vunpack.c.l.b16 %v416
    %v455 = vunpack.c.l.b16 %v417
    %v456 = vpack.c.b16 %v441, %v440
    %v457 = vpack.c.b16 %v443, %v442
    %v458 = vpack.c.b16 %v445, %v444
    %v459 = vpack.c.b16 %v447, %v446
    %v460 = vpack.c.b16 %v449, %v448
    %v461 = vpack.c.b16 %v451, %v450
    %v462 = vpack.c.b16 %v453, %v452
    %v463 = vpack.c.b16 %v455, %v454
    %472 = vmatprep.subr.bf16.mxu0 0
    %473 = vmatpush1.bf16.msra.mxu0 %v463
    %474 = vmatprep.subr.bf16.mxu0 0
    %475 = vmatpush1.bf16.msra.mxu0 %v462
    %476 = vmatprep.subr.bf16.mxu0 0
    %477 = vmatpush1.bf16.msra.mxu0 %v461
    %478 = vmatprep.subr.bf16.mxu0 0
    %479 = vmatpush1.bf16.msra.mxu0 %v460
    %480 = vmatprep.subr.bf16.mxu0 0
    %481 = vmatpush1.bf16.msra.mxu0 %v459
    %482 = vmatprep.subr.bf16.mxu0 0
    %483 = vmatpush1.bf16.msra.mxu0 %v458
    %484 = vmatprep.subr.bf16.mxu0 0
    %485 = vmatpush1.bf16.msra.mxu0 %v457
    %486 = vmatprep.subr.bf16.mxu0 0
    %487 = vmatpush1.bf16.msra.mxu0 %v456
    %488 = vmatprep.subr.bf16.mxu0 0
    %489 = vmatpush2.bf16.msra.mxu0 0
    %490 = vmatprep.subr.bf16.mxu0 0
    %491 = vmatpush2.bf16.msra.mxu0 0
    %492 = vmatprep.subr.bf16.mxu0 0
    %493 = vmatpush2.bf16.msra.mxu0 0
    %494 = vmatprep.subr.bf16.mxu0 0
    %495 = vmatpush2.bf16.msra.mxu0 0
    %496 = vmatprep.subr.bf16.mxu0 0
    %497 = vmatpush2.bf16.msra.mxu0 0
    %498 = vmatprep.subr.bf16.mxu0 0
    %499 = vmatpush2.bf16.msra.mxu0 0
    %500 = vmatprep.subr.bf16.mxu0 0
    %501 = vmatpush2.bf16.msra.mxu0 0
    %502 = vmatprep.subr.bf16.mxu0 0
    %503 = vmatpush2.bf16.msra.mxu0 0
    %504 = vmatprep.mubr.bf16.mxu0 0
    %505 = vmatmul.mubr.bf16.gmra.mxu0 %v401
    %v506 = vpop.f32.mrf.mxu0
    %v507 = vadd.f32 %v422, %v506
    %v508 = vpop.f32.mrf.mxu0
    %v509 = vpop.f32.mrf.mxu0
    %v510 = vadd.f32 %v422, %v509
    %v511 = vpop.f32.mrf.mxu0
    %512 = vdwg.mxu0
    %v513 = vmax.f32 %v507, 0.0
    %v514 = vmax.f32 %v510, 0.0
    %v515 = vpack.c.bf16 %v514, %v513
    %v516 = vld [vmem:[%s7] sm:$0xf]
    %v517 = vld [vmem:[%s7 + $0x4] sm:$0x1]
    %v519 = vlaneseq
    %v520 = vshrl.u32 %v519, 7
    %v521 = vsub.s32 0, %v520
    %v522 = vrot.slane %v70, %v521
    %v526 = vunpack.c.l.b16 %v516
    %v527 = vunpack.c.l.b16 %v517
    %v528 = vpack.c.b16 %v527, %v526
    %vm529 = vcmask 80896
    %v531 = vsel %vm529, %v80, 0
    %vm533 = vcmask 1044480
    %v535 = vsel %vm533, %v528, 0
    %537 = vmatprep.subr.bf16.mxu0 0
    %538 = vmatpush1.bf16.msra.mxu0 0
    %539 = vmatprep.subr.bf16.mxu0 0
    %540 = vmatpush1.bf16.msra.mxu0 0
    %541 = vmatprep.subr.bf16.mxu0 0
    %542 = vmatpush1.bf16.msra.mxu0 0
    %543 = vmatprep.subr.bf16.mxu0 0
    %544 = vmatpush1.bf16.msra.mxu0 0
    %545 = vmatprep.subr.bf16.mxu0 0
    %546 = vmatpush1.bf16.msra.mxu0 0
    %547 = vmatprep.subr.bf16.mxu0 0
    %548 = vmatpush1.bf16.msra.mxu0 0
    %549 = vmatprep.subr.bf16.mxu0 0
    %550 = vmatpush1.bf16.msra.mxu0 0
    %551 = vmatprep.subr.bf16.mxu0 0
    %552 = vmatpush1.bf16.msra.mxu0 %v535
    %553 = vmatprep.subr.bf16.mxu0 0
    %554 = vmatpush2.bf16.msra.mxu0 0
    %555 = vmatprep.subr.bf16.mxu0 0
    %556 = vmatpush2.bf16.msra.mxu0 0
    %557 = vmatprep.subr.bf16.mxu0 0
    %558 = vmatpush2.bf16.msra.mxu0 0
    %559 = vmatprep.subr.bf16.mxu0 0
    %560 = vmatpush2.bf16.msra.mxu0 0
    %561 = vmatprep.subr.bf16.mxu0 0
    %562 = vmatpush2.bf16.msra.mxu0 0
    %563 = vmatprep.subr.bf16.mxu0 0
    %564 = vmatpush2.bf16.msra.mxu0 0
    %565 = vmatprep.subr.bf16.mxu0 0
    %566 = vmatpush2.bf16.msra.mxu0 0
    %567 = vmatprep.subr.bf16.mxu0 0
    %568 = vmatpush2.bf16.msra.mxu0 0
    %569 = vmatprep.mubr.bf16.mxu0 0
    %570 = vmatmul.mubr.bf16.gmra.mxu0 %v531
    %v571 = vpop.f32.mrf.mxu0
    %v572 = vadd.f32 %v522, %v571
    %v573 = vpop.f32.mrf.mxu0
    %v574 = vpop.f32.mrf.mxu0
    %v575 = vadd.f32 %v522, %v574
    %v576 = vpop.f32.mrf.mxu0
    %577 = vdwg.mxu0
    %v578 = vmax.f32 %v572, 0.0
    %v579 = vmax.f32 %v575, 0.0
    %v580 = vpack.c.bf16 %v579, %v578
    %v581 = vld [vmem:[%s8] sm:$0xf]
    %v582 = vld [vmem:[%s8 + $0x4] sm:$0xf]
    %v583 = vld [vmem:[%s8 + $0x8] sm:$0xf]
    %v584 = vld [vmem:[%s8 + $0xc] sm:$0xf]
    %v585 = vld [vmem:[%s9] sm:$0x3]
    %vm586 = vcmask 31744
    %v588 = vsel %vm586, %v580, 0
    %vm590 = vcmask 1041408
    %v592 = vsel %vm590, %v585, 0
    %594 = vmatprep.subr.bf16.mxu0 0
    %595 = vmatpush1.bf16.msra.mxu0 0
    %596 = vmatprep.subr.bf16.mxu0 0
    %597 = vmatpush1.bf16.msra.mxu0 0
    %598 = vmatprep.subr.bf16.mxu0 0
    %599 = vmatpush1.bf16.msra.mxu0 0
    %600 = vmatprep.subr.bf16.mxu0 0
    %601 = vmatpush1.bf16.msra.mxu0 0
    %602 = vmatprep.subr.bf16.mxu0 0
    %603 = vmatpush1.bf16.msra.mxu0 0
    %604 = vmatprep.subr.bf16.mxu0 0
    %605 = vmatpush1.bf16.msra.mxu0 0
    %606 = vmatprep.subr.bf16.mxu0 0
    %607 = vmatpush1.bf16.msra.mxu0 0
    %608 = vmatprep.subr.bf16.mxu0 0
    %609 = vmatpush1.bf16.msra.mxu0 %v592
    %610 = vmatprep.subr.bf16.mxu0 0
    %611 = vmatpush2.bf16.msra.mxu0 0
    %612 = vmatprep.subr.bf16.mxu0 0
    %613 = vmatpush2.bf16.msra.mxu0 0
    %614 = vmatprep.subr.bf16.mxu0 0
    %615 = vmatpush2.bf16.msra.mxu0 0
    %616 = vmatprep.subr.bf16.mxu0 0
    %617 = vmatpush2.bf16.msra.mxu0 0
    %618 = vmatprep.subr.bf16.mxu0 0
    %619 = vmatpush2.bf16.msra.mxu0 0
    %620 = vmatprep.subr.bf16.mxu0 0
    %621 = vmatpush2.bf16.msra.mxu0 0
    %622 = vmatprep.subr.bf16.mxu0 0
    %623 = vmatpush2.bf16.msra.mxu0 0
    %624 = vmatprep.subr.bf16.mxu0 0
    %625 = vmatpush2.bf16.msra.mxu0 0
    %626 = vmatprep.mubr.bf16.mxu0 0
    %627 = vmatmul.mubr.bf16.gmra.mxu0 %v588
    %v628 = vpop.f32.mrf.mxu0
    %v629 = vadd.f32 0.0, %v628
    %v630 = vpop.f32.mrf.mxu0
    %v631 = vpop.f32.mrf.mxu0
    %v632 = vadd.f32 0.0, %v631
    %v633 = vpop.f32.mrf.mxu0
    %634 = vdwg.mxu0
    %v639 = vunpack.c.l.b16 %v581
    %v640 = vunpack.c.l.b16 %v582
    %v641 = vunpack.c.l.b16 %v583
    %v642 = vunpack.c.l.b16 %v584
    %v643 = vpack.c.b16 %v640, %v639
    %v644 = vpack.c.b16 %v642, %v641
    %v648 = vsel %vm97, %v515, 0
    %650 = vmatprep.subr.bf16.mxu0 0
    %651 = vmatpush1.bf16.msra.mxu0 0
    %652 = vmatprep.subr.bf16.mxu0 0
    %653 = vmatpush1.bf16.msra.mxu0 0
    %654 = vmatprep.subr.bf16.mxu0 0
    %655 = vmatpush1.bf16.msra.mxu0 0
    %656 = vmatprep.subr.bf16.mxu0 0
    %657 = vmatpush1.bf16.msra.mxu0 0
    %658 = vmatprep.subr.bf16.mxu0 0
    %659 = vmatpush1.bf16.msra.mxu0 0
    %660 = vmatprep.subr.bf16.mxu0 0
    %661 = vmatpush1.bf16.msra.mxu0 0
    %662 = vmatprep.subr.bf16.mxu0 0
    %663 = vmatpush1.bf16.msra.mxu0 %v644
    %664 = vmatprep.subr.bf16.mxu0 0
    %665 = vmatpush1.bf16.msra.mxu0 %v643
    %666 = vmatprep.subr.bf16.mxu0 0
    %667 = vmatpush2.bf16.msra.mxu0 0
    %668 = vmatprep.subr.bf16.mxu0 0
    %669 = vmatpush2.bf16.msra.mxu0 0
    %670 = vmatprep.subr.bf16.mxu0 0
    %671 = vmatpush2.bf16.msra.mxu0 0
    %672 = vmatprep.subr.bf16.mxu0 0
    %673 = vmatpush2.bf16.msra.mxu0 0
    %674 = vmatprep.subr.bf16.mxu0 0
    %675 = vmatpush2.bf16.msra.mxu0 0
    %676 = vmatprep.subr.bf16.mxu0 0
    %677 = vmatpush2.bf16.msra.mxu0 0
    %678 = vmatprep.subr.bf16.mxu0 0
    %679 = vmatpush2.bf16.msra.mxu0 0
    %680 = vmatprep.subr.bf16.mxu0 0
    %681 = vmatpush2.bf16.msra.mxu0 0
    %682 = vmatprep.mubr.bf16.mxu0 0
    %683 = vmatmul.mubr.bf16.gmra.mxu0 %v648
    %v684 = vpop.f32.mrf.mxu0
    %v685 = vadd.f32 %v629, %v684
    %v686 = vpop.f32.mrf.mxu0
    %v687 = vpop.f32.mrf.mxu0
    %v688 = vadd.f32 %v632, %v687
    %v689 = vpop.f32.mrf.mxu0
    %690 = vdwg.mxu0
    %v692 = vlaneseq
    %v693 = vshrl.u32 %v692, 7
    %v694 = vsub.s32 0, %v693
    %v695 = vrot.slane %v71, %v694
    %v697 = vadd.f32 %v685, %v695
    %v698 = vadd.f32 %v688, %v695
    %v699 = vmax.f32 %v697, 0.0
    %v700 = vmax.f32 %v698, 0.0
    %vm701 = vcmask 15360
    %702 = vst.msk [vmem:[%s11] sm:$0xff] %vm701, %v699
    %703 = vst.msk [vmem:[%s11 + $0x8] sm:$0xff] %vm701, %v700
    // Predicated region
    $region54: #{tpu_custom_call.1} parent=1 // pred_check
      _
    $region55: #{tpu_custom_call.1} parent=1 // pred_check_branch
      %705 = sbr.rel (0) target = $region57
    $region56: #{tpu_custom_call.1} parent=1 // pred_region
      _
    $region57: #{tpu_custom_call.1} parent=1 // pred_fallthru
      _
    // Predicated region
    $region58: #{tpu_custom_call.1} parent=1 // pred_check
      _
    $region59: #{tpu_custom_call.1} parent=1 // pred_check_branch
      %707 = sbr.rel (0) target = $region61
    $region60: #{tpu_custom_call.1} parent=1 // pred_region
      _
    $region61: #{tpu_custom_call.1} parent=1 // pred_fallthru
      _
    %708 = vsyncpa [#allocation3], 1
    %709 = vsyncpa [#allocation5], 1

</llo_original>
